<compile_context>
chip_gen: v7x
topology: tpu7x:2x2x1
jax: 0.10.0
libtpu: 0.0.40
codegen_flags: <defaults>
</compile_context>

<pallas_src>
import jax
import jax.numpy as jnp
import numpy as np
from jax.experimental import pallas as pl
from jax.experimental.pallas import tpu as pltpu


def _round_up(x, m):
    return ((x + m - 1) // m) * m


def fused_mlp_kernel(x_ref,
                     w1_ref, s1_ref, t1_ref,   # fc1 + fused BN1: (cin, cout), (1, cout), (1, cout)
                     w3_ref, s3_ref, t3_ref,   # fc3 + fused BN3: (cout, cin), (1, cin), (1, cin)
                     out_ref):
    x = x_ref[...]                                            # (tm, cin)
    h = jnp.dot(x, w1_ref[...], preferred_element_type=jnp.float32)
    h = jnp.maximum(h * s1_ref[...] + t1_ref[...], 0.0)       # (tm, cout)   stays in VMEM
    y = jnp.dot(h, w3_ref[...], preferred_element_type=jnp.float32)
    y = jnp.maximum(y * s3_ref[...] + t3_ref[...], 0.0)       # (tm, cout//2)
    out_ref[...] = y.astype(out_ref.dtype)


def image_fuse_coordinate_conv_forward(x, params, *, tm=1024):
    """x: (B, npoints, nsamples, cin) -> (B, npoints, nsamples, cin)."""
    B, NP, NS, cin = x.shape
    w1, s1, t1, w3, s3, t3 = params
    cout = w1.shape[1]
    M = B * NP * NS

    # Clamp the row tile so small problems don't over-pad while the grid still
    # has ~>=8 steps (megacore sharding on v7x); tm stays 8-aligned.
    tm = max(8, min(tm, _round_up(pl.cdiv(M, 8), 8)))
    Mp = _round_up(M, tm)

    x_flat = x.reshape(M, cin)          # pure reshape — no transpose / extra HBM pass
    if Mp != M:
        x_flat = jnp.pad(x_flat, ((0, Mp - M), (0, 0)))

    # Grid-invariant weight/scale blocks (constant index_map).
    full = lambda shape: pl.BlockSpec(shape, lambda i: (0, 0))

    out_flat = pl.pallas_call(
        fused_mlp_kernel,
        out_shape=jax.ShapeDtypeStruct((Mp, cout // 2), jnp.float32),
        grid_spec=pltpu.PrefetchScalarGridSpec(
            num_scalar_prefetch=0,
            grid=(Mp // tm,),
            in_specs=[
                pl.BlockSpec((tm, cin), lambda i: (i, 0)),               # x rows
                full((cin, cout)), full((1, cout)), full((1, cout)),     # layer 1
                full((cout, cout // 2)), full((1, cout // 2)), full((1, cout // 2)),  # layer 2
            ],
            out_specs=pl.BlockSpec((tm, cout // 2), lambda i: (i, 0)),
        ),
        compiler_params=pltpu.CompilerParams(
            dimension_semantics=("parallel",)),
    )(x_flat, w1, s1, t1, w3, s3, t3)

    return out_flat[:M].reshape(B, NP, NS, cout // 2)


def make_params(key, cin):
    """Deterministic synthetic parameters with the shapes the module implies;
    eval-mode BN + Linear bias folded into per-channel scale/shift."""
    cout = 2 * cin
    eps = 1e-5
    ks = jax.random.split(key, 12)

    def fused_layer(kw, kb, kg, kbe, km, kv, fan_in, fan_out):
        w = 0.1 * jax.random.normal(kw, (fan_in, fan_out), jnp.float32)   # Linear.weight^T
        b = 0.1 * jax.random.normal(kb, (1, fan_out), jnp.float32)        # Linear.bias
        gamma = 1.0 + 0.1 * jax.random.normal(kg, (1, fan_out), jnp.float32)
        beta = 0.1 * jax.random.normal(kbe, (1, fan_out), jnp.float32)
        mean = 0.1 * jax.random.normal(km, (1, fan_out), jnp.float32)
        var = jnp.abs(jax.random.normal(kv, (1, fan_out), jnp.float32)) + 0.5
        s = gamma / jnp.sqrt(var + eps)          # fused BN scale
        t = beta - mean * s + b * s              # fused BN shift (bias folded in)
        return w, s, t

    w1, s1, t1 = fused_layer(ks[0], ks[1], ks[2], ks[3], ks[4], ks[5], cin, cout)
    w3, s3, t3 = fused_layer(ks[6], ks[7], ks[8], ks[9], ks[10], ks[11], cout, cout // 2)
    return (w1, s1, t1, w3, s3, t3)


def reference_forward(x, params):
    B, NP, NS, cin = x.shape
    w1, s1, t1, w3, s3, t3 = params
    xf = x.reshape(-1, cin)
    h = jnp.maximum((xf @ w1) * s1 + t1, 0.0)
    y = jnp.maximum((h @ w3) * s3 + t3, 0.0)
    return y.reshape(B, NP, NS, -1)


if __name__ == "__main__":
    B, NP, NS, cin = 2, 16, 8, 32          # (batch, npoints, nsamples, channels)
    key = jax.random.PRNGKey(0)
    k_x, k_p = jax.random.split(key)

    x = jax.random.normal(k_x, (B, NP, NS, cin), jnp.float32)
    params = make_params(k_p, cin)

    out = jax.block_until_ready(image_fuse_coordinate_conv_forward(x, params))
    ref = jax.block_until_ready(reference_forward(x, params))

    assert out.shape == (B, NP, NS, cin)
    np.testing.assert_allclose(np.asarray(out), np.asarray(ref), rtol=1e-4, atol=1e-4)
    print("KERNEL_OK")
</pallas_src>

<mosaic_0001>
module attributes {stable_mosaic.version = 11 : i64} {
  func.func @fused_mlp_kernel(%arg0: i32, %arg1: memref<32x32xf32, #tpu.memory_space<vmem>>, %arg2: memref<32x64xf32, #tpu.memory_space<vmem>>, %arg3: memref<1x64xf32, #tpu.memory_space<vmem>>, %arg4: memref<1x64xf32, #tpu.memory_space<vmem>>, %arg5: memref<64x32xf32, #tpu.memory_space<vmem>>, %arg6: memref<1x32xf32, #tpu.memory_space<vmem>>, %arg7: memref<1x32xf32, #tpu.memory_space<vmem>>, %arg8: memref<32x32xf32, #tpu.memory_space<vmem>>) attributes {dimension_semantics = [#tpu.dimension_semantics<parallel>], iteration_bounds = array<i64: 8>, scalar_prefetch = 0 : i64, scratch_operands = 0 : i64, tpu.core_type = #tpu.core_type<tc>, window_params = [{transform_indices = @transform_0, window_bounds = array<i64: 32, 32>}, {pipeline_mode = #tpu.pipeline_mode<synchronous>, transform_indices = @transform_1, window_bounds = array<i64: 32, 64>}, {pipeline_mode = #tpu.pipeline_mode<synchronous>, transform_indices = @transform_2, window_bounds = array<i64: 1, 64>}, {pipeline_mode = #tpu.pipeline_mode<synchronous>, transform_indices = @transform_3, window_bounds = array<i64: 1, 64>}, {pipeline_mode = #tpu.pipeline_mode<synchronous>, transform_indices = @transform_4, window_bounds = array<i64: 64, 32>}, {pipeline_mode = #tpu.pipeline_mode<synchronous>, transform_indices = @transform_5, window_bounds = array<i64: 1, 32>}, {pipeline_mode = #tpu.pipeline_mode<synchronous>, transform_indices = @transform_6, window_bounds = array<i64: 1, 32>}, {transform_indices = @transform_7, window_bounds = array<i64: 32, 32>}]} {
    %c0 = arith.constant 0 : index
    %c0_0 = arith.constant 0 : index
    %0 = vector.load %arg1[%c0, %c0_0] : memref<32x32xf32, #tpu.memory_space<vmem>>, vector<32x32xf32>
    %c0_1 = arith.constant 0 : index
    %c0_2 = arith.constant 0 : index
    %1 = vector.load %arg2[%c0_1, %c0_2] : memref<32x64xf32, #tpu.memory_space<vmem>>, vector<32x64xf32>
    %cst = arith.constant dense<0.000000e+00> : vector<32x64xf32>
    %2 = tpu.matmul %0, %1, %cst {dimension_numbers = #tpu.dot_dimension_numbers<[1], [0], [0], [1], [0, 0, 1, 1], [], []>} : vector<32x32xf32>, vector<32x64xf32>, vector<32x64xf32> -> vector<32x64xf32>
    %c0_3 = arith.constant 0 : index
    %c0_4 = arith.constant 0 : index
    %3 = vector.load %arg3[%c0_3, %c0_4] : memref<1x64xf32, #tpu.memory_space<vmem>>, vector<1x64xf32>
    %4 = vector.broadcast %3 : vector<1x64xf32> to vector<32x64xf32>
    %5 = arith.mulf %2, %4 : vector<32x64xf32>
    %c0_5 = arith.constant 0 : index
    %c0_6 = arith.constant 0 : index
    %6 = vector.load %arg4[%c0_5, %c0_6] : memref<1x64xf32, #tpu.memory_space<vmem>>, vector<1x64xf32>
    %7 = vector.broadcast %6 : vector<1x64xf32> to vector<32x64xf32>
    %8 = arith.addf %5, %7 : vector<32x64xf32>
    %cst_7 = arith.constant 0.000000e+00 : f32
    %9 = vector.broadcast %cst_7 : f32 to vector<32x64xf32>
    %10 = arith.maximumf %8, %9 : vector<32x64xf32>
    %c0_8 = arith.constant 0 : index
    %c0_9 = arith.constant 0 : index
    %11 = vector.load %arg5[%c0_8, %c0_9] : memref<64x32xf32, #tpu.memory_space<vmem>>, vector<64x32xf32>
    %cst_10 = arith.constant dense<0.000000e+00> : vector<32x32xf32>
    %12 = tpu.matmul %10, %11, %cst_10 {dimension_numbers = #tpu.dot_dimension_numbers<[1], [0], [0], [1], [0, 0, 1, 1], [], []>} : vector<32x64xf32>, vector<64x32xf32>, vector<32x32xf32> -> vector<32x32xf32>
    %c0_11 = arith.constant 0 : index
    %c0_12 = arith.constant 0 : index
    %13 = vector.load %arg6[%c0_11, %c0_12] : memref<1x32xf32, #tpu.memory_space<vmem>>, vector<1x32xf32>
    %14 = vector.broadcast %13 : vector<1x32xf32> to vector<32x32xf32>
    %15 = arith.mulf %12, %14 : vector<32x32xf32>
    %c0_13 = arith.constant 0 : index
    %c0_14 = arith.constant 0 : index
    %16 = vector.load %arg7[%c0_13, %c0_14] : memref<1x32xf32, #tpu.memory_space<vmem>>, vector<1x32xf32>
    %17 = vector.broadcast %16 : vector<1x32xf32> to vector<32x32xf32>
    %18 = arith.addf %15, %17 : vector<32x32xf32>
    %cst_15 = arith.constant 0.000000e+00 : f32
    %19 = vector.broadcast %cst_15 : f32 to vector<32x32xf32>
    %20 = arith.maximumf %18, %19 : vector<32x32xf32>
    %c0_16 = arith.constant 0 : index
    %c0_17 = arith.constant 0 : index
    %21 = vector.load %arg8[%c0_16, %c0_17] : memref<32x32xf32, #tpu.memory_space<vmem>>, vector<32x32xf32>
    tpu.vector_store %arg8[%c0_16, %c0_17], %20 {strides = array<i32>} : memref<32x32xf32, #tpu.memory_space<vmem>>, vector<32x32xf32>,
    return
  }
  func.func @transform_0(%arg0: i32) -> (i32, i32) {
    %c0_i32 = arith.constant 0 : i32
    %c0_i32_0 = arith.constant 0 : i32
    return %arg0, %c0_i32 : i32, i32
  }
  func.func @transform_1(%arg0: i32) -> (i32, i32) {
    %c0_i32 = arith.constant 0 : i32
    %c0_i32_0 = arith.constant 0 : i32
    %c0_i32_1 = arith.constant 0 : i32
    return %c0_i32, %c0_i32_0 : i32, i32
  }
  func.func @transform_2(%arg0: i32) -> (i32, i32) {
    %c0_i32 = arith.constant 0 : i32
    %c0_i32_0 = arith.constant 0 : i32
    %c0_i32_1 = arith.constant 0 : i32
    return %c0_i32, %c0_i32_0 : i32, i32
  }
  func.func @transform_3(%arg0: i32) -> (i32, i32) {
    %c0_i32 = arith.constant 0 : i32
    %c0_i32_0 = arith.constant 0 : i32
    %c0_i32_1 = arith.constant 0 : i32
    return %c0_i32, %c0_i32_0 : i32, i32
  }
  func.func @transform_4(%arg0: i32) -> (i32, i32) {
    %c0_i32 = arith.constant 0 : i32
    %c0_i32_0 = arith.constant 0 : i32
    %c0_i32_1 = arith.constant 0 : i32
    return %c0_i32, %c0_i32_0 : i32, i32
  }
  func.func @transform_5(%arg0: i32) -> (i32, i32) {
    %c0_i32 = arith.constant 0 : i32
    %c0_i32_0 = arith.constant 0 : i32
    %c0_i32_1 = arith.constant 0 : i32
    return %c0_i32, %c0_i32_0 : i32, i32
  }
  func.func @transform_6(%arg0: i32) -> (i32, i32) {
    %c0_i32 = arith.constant 0 : i32
    %c0_i32_0 = arith.constant 0 : i32
    %c0_i32_1 = arith.constant 0 : i32
    return %c0_i32, %c0_i32_0 : i32, i32
  }
  func.func @transform_7(%arg0: i32) -> (i32, i32) {
    %c0_i32 = arith.constant 0 : i32
    %c0_i32_0 = arith.constant 0 : i32
    return %arg0, %c0_i32 : i32, i32
  }
}

</mosaic_0001>

<llo_original>
// kernel: tpu_custom_call.1
$region0: #{tpu_custom_call.1}
  #allocation0 [shape = 'u32[]', space=smem, size = 0x4, offset = 0x4, fixed_abs, tag = 'smem constant byte address 0x4 - core index']
  #allocation1 [shape = 'u32[144,128]{1,0:T(1,128)}', space=vmem, size = 0x12000, scoped, tag = 'internal scratch']
  %s0 = inlined_call_operand.vmem [shape: f32[256,32], index: 0, kind: input, shape index: {}]
  %s1 = inlined_call_operand.vmem [shape: f32[32,64], index: 1, kind: input, shape index: {}]
  %s2 = inlined_call_operand.vmem [shape: f32[1,64], index: 2, kind: input, shape index: {}]
  %s3 = inlined_call_operand.vmem [shape: f32[1,64], index: 3, kind: input, shape index: {}]
  %s4 = inlined_call_operand.vmem [shape: f32[64,32], index: 4, kind: input, shape index: {}]
  %s5 = inlined_call_operand.vmem [shape: f32[1,32], index: 5, kind: input, shape index: {}]
  %s6 = inlined_call_operand.vmem [shape: f32[1,32], index: 6, kind: input, shape index: {}]
  %s7 = inlined_call_operand.vmem [shape: f32[256,32], index: 7, kind: output, shape index: {}]
  %s8 = sld [smem:[#allocation0]]
  $region61: #{tpu_custom_call.1} parent=0
    _
  %s10 = ssub.s32 1, %s8
  %s11 = scalar_select 0, %s10, %s8
  loop: start=0, step=1, limit=10
  $region2: #{tpu_custom_call.1} parent=0 // loop_pre_header
    _
  $region3: #{tpu_custom_call.1} parent=0 // loop_header
    %s13 = sphi 0, %s17
    %p14 = scmp.ge.s32.totalorder %s13, 10
    %s23 = sphi 0, %s25
    %s26 = sphi 0, %s23
    %s27 = sphi 0, %s26
    %s43 = sphi 0, %s27
    %s47 = sphi 0, %s47
    %s49 = sphi 0, %s47
    %s50 = sphi 0, %s49
    %s64 = sphi 0, %s50
    %s68 = sphi 0, %s68
    %s70 = sphi 0, %s68
    %s71 = sphi 0, %s70
    %s85 = sphi 0, %s71
    %s89 = sphi 0, %s89
    %s91 = sphi 0, %s89
    %s92 = sphi 0, %s91
    %s106 = sphi 0, %s92
    %s110 = sphi 0, %s110
    %s112 = sphi 0, %s110
    %s113 = sphi 0, %s112
    %s127 = sphi 0, %s113
    %s131 = sphi 0, %s131
    %s133 = sphi 0, %s131
    %s134 = sphi 0, %s133
    %s148 = sphi 0, %s134
    %s152 = sphi 0, %s152
    %s154 = sphi 0, %s152
    %s155 = sphi 0, %s154
    %s169 = sphi 0, %s155
    %s175 = sphi 0, %s177
    %s178 = sphi 0, %s175
    %s179 = sphi 0, %s178
    %s195 = sphi 0, %s179
  $region4: #{tpu_custom_call.1} parent=0 // loop_header_branch
    %16 = sbr.rel (%p14) target = $region8
  $region5: #{tpu_custom_call.1} parent=0 // loop_body
    %s18 = ssub.s32 %s13, 1
    %s19 = ssub.s32 %s13, 2
    %s20 = sadd.s32 %s13, 1
    %s21 = ssub.s32 %s13, %s20
    %p22 = scmp.eq.s32.totalorder %s21, 0
    %s24 = sadd.s32 %s23, 1
    %s25 = scalar_select %p22, %s23, %s24
    %p28 = pneg %p22
    %p29 = scmp.eq.s32.totalorder %s13, 7
    %p30 = por %p28, %p29
    %p31 = scmp.ne.s32.totalorder %s23, %s26
    %p32 = scmp.eq.s32.totalorder %s13, 0
    %p33 = por %p31, %p32
    %p34 = scmp.ne.s32.totalorder %s23, %s26
    %p35 = scmp.eq.s32.totalorder %s18, 7
    %p36 = por %p34, %p35
    %p37 = scmp.ne.s32.totalorder %s26, %s27
    %p38 = scmp.eq.s32.totalorder %s18, 0
    %p39 = por %p37, %p38
    %p40 = scmp.ne.s32.totalorder %s26, %s27
    %p41 = scmp.eq.s32.totalorder %s19, 7
    %p42 = por %p40, %p41
    %p44 = scmp.ne.s32.totalorder %s27, %s43
    %p45 = scmp.eq.s32.totalorder %s19, 0
    %p46 = por %p44, %p45
    %s48 = sadd.s32 %s47, 1
    %p51 = scmp.eq.s32.totalorder %s13, 7
    %p52 = scmp.ne.s32.totalorder %s47, %s49
    %p53 = scmp.eq.s32.totalorder %s13, 0
    %p54 = por %p52, %p53
    %p55 = scmp.ne.s32.totalorder %s47, %s49
    %p56 = scmp.eq.s32.totalorder %s18, 7
    %p57 = por %p55, %p56
    %p58 = scmp.ne.s32.totalorder %s49, %s50
    %p59 = scmp.eq.s32.totalorder %s18, 0
    %p60 = por %p58, %p59
    %p61 = scmp.ne.s32.totalorder %s49, %s50
    %p62 = scmp.eq.s32.totalorder %s19, 7
    %p63 = por %p61, %p62
    %p65 = scmp.ne.s32.totalorder %s50, %s64
    %p66 = scmp.eq.s32.totalorder %s19, 0
    %p67 = por %p65, %p66
    %s69 = sadd.s32 %s68, 1
    %p72 = scmp.eq.s32.totalorder %s13, 7
    %p73 = scmp.ne.s32.totalorder %s68, %s70
    %p74 = scmp.eq.s32.totalorder %s13, 0
    %p75 = por %p73, %p74
    %p76 = scmp.ne.s32.totalorder %s68, %s70
    %p77 = scmp.eq.s32.totalorder %s18, 7
    %p78 = por %p76, %p77
    %p79 = scmp.ne.s32.totalorder %s70, %s71
    %p80 = scmp.eq.s32.totalorder %s18, 0
    %p81 = por %p79, %p80
    %p82 = scmp.ne.s32.totalorder %s70, %s71
    %p83 = scmp.eq.s32.totalorder %s19, 7
    %p84 = por %p82, %p83
    %p86 = scmp.ne.s32.totalorder %s71, %s85
    %p87 = scmp.eq.s32.totalorder %s19, 0
    %p88 = por %p86, %p87
    %s90 = sadd.s32 %s89, 1
    %p93 = scmp.eq.s32.totalorder %s13, 7
    %p94 = scmp.ne.s32.totalorder %s89, %s91
    %p95 = scmp.eq.s32.totalorder %s13, 0
    %p96 = por %p94, %p95
    %p97 = scmp.ne.s32.totalorder %s89, %s91
    %p98 = scmp.eq.s32.totalorder %s18, 7
    %p99 = por %p97, %p98
    %p100 = scmp.ne.s32.totalorder %s91, %s92
    %p101 = scmp.eq.s32.totalorder %s18, 0
    %p102 = por %p100, %p101
    %p103 = scmp.ne.s32.totalorder %s91, %s92
    %p104 = scmp.eq.s32.totalorder %s19, 7
    %p105 = por %p103, %p104
    %p107 = scmp.ne.s32.totalorder %s92, %s106
    %p108 = scmp.eq.s32.totalorder %s19, 0
    %p109 = por %p107, %p108
    %s111 = sadd.s32 %s110, 1
    %p114 = scmp.eq.s32.totalorder %s13, 7
    %p115 = scmp.ne.s32.totalorder %s110, %s112
    %p116 = scmp.eq.s32.totalorder %s13, 0
    %p117 = por %p115, %p116
    %p118 = scmp.ne.s32.totalorder %s110, %s112
    %p119 = scmp.eq.s32.totalorder %s18, 7
    %p120 = por %p118, %p119
    %p121 = scmp.ne.s32.totalorder %s112, %s113
    %p122 = scmp.eq.s32.totalorder %s18, 0
    %p123 = por %p121, %p122
    %p124 = scmp.ne.s32.totalorder %s112, %s113
    %p125 = scmp.eq.s32.totalorder %s19, 7
    %p126 = por %p124, %p125
    %p128 = scmp.ne.s32.totalorder %s113, %s127
    %p129 = scmp.eq.s32.totalorder %s19, 0
    %p130 = por %p128, %p129
    %s132 = sadd.s32 %s131, 1
    %p135 = scmp.eq.s32.totalorder %s13, 7
    %p136 = scmp.ne.s32.totalorder %s131, %s133
    %p137 = scmp.eq.s32.totalorder %s13, 0
    %p138 = por %p136, %p137
    %p139 = scmp.ne.s32.totalorder %s131, %s133
    %p140 = scmp.eq.s32.totalorder %s18, 7
    %p141 = por %p139, %p140
    %p142 = scmp.ne.s32.totalorder %s133, %s134
    %p143 = scmp.eq.s32.totalorder %s18, 0
    %p144 = por %p142, %p143
    %p145 = scmp.ne.s32.totalorder %s133, %s134
    %p146 = scmp.eq.s32.totalorder %s19, 7
    %p147 = por %p145, %p146
    %p149 = scmp.ne.s32.totalorder %s134, %s148
    %p150 = scmp.eq.s32.totalorder %s19, 0
    %p151 = por %p149, %p150
    %s153 = sadd.s32 %s152, 1
    %p156 = scmp.eq.s32.totalorder %s13, 7
    %p157 = scmp.ne.s32.totalorder %s152, %s154
    %p158 = scmp.eq.s32.totalorder %s13, 0
    %p159 = por %p157, %p158
    %p160 = scmp.ne.s32.totalorder %s152, %s154
    %p161 = scmp.eq.s32.totalorder %s18, 7
    %p162 = por %p160, %p161
    %p163 = scmp.ne.s32.totalorder %s154, %s155
    %p164 = scmp.eq.s32.totalorder %s18, 0
    %p165 = por %p163, %p164
    %p166 = scmp.ne.s32.totalorder %s154, %s155
    %p167 = scmp.eq.s32.totalorder %s19, 7
    %p168 = por %p166, %p167
    %p170 = scmp.ne.s32.totalorder %s155, %s169
    %p171 = scmp.eq.s32.totalorder %s19, 0
    %p172 = por %p170, %p171
    %s173 = ssub.s32 %s13, %s20
    %p174 = scmp.eq.s32.totalorder %s173, 0
    %s176 = sadd.s32 %s175, 1
    %s177 = scalar_select %p174, %s175, %s176
    %p180 = pneg %p174
    %p181 = scmp.eq.s32.totalorder %s13, 7
    %p182 = por %p180, %p181
    %p183 = scmp.ne.s32.totalorder %s175, %s178
    %p184 = scmp.eq.s32.totalorder %s13, 0
    %p185 = por %p183, %p184
    %p186 = scmp.ne.s32.totalorder %s175, %s178
    %p187 = scmp.eq.s32.totalorder %s18, 7
    %p188 = por %p186, %p187
    %p189 = scmp.ne.s32.totalorder %s178, %s179
    %p190 = scmp.eq.s32.totalorder %s18, 0
    %p191 = por %p189, %p190
    %p192 = scmp.ne.s32.totalorder %s178, %s179
    %p193 = scmp.eq.s32.totalorder %s19, 7
    %p194 = por %p192, %p193
    %p196 = scmp.ne.s32.totalorder %s179, %s195
    %p197 = scmp.eq.s32.totalorder %s19, 0
    %p198 = por %p196, %p197
    %p199 = scmp.le.s32.totalorder 1, %s13
    %p200 = scmp.lt.s32.totalorder %s13, 9
    %p201 = pnand %p199, %p200
    %p202 = pneg %p201
    // Predicated region
    $region9: #{tpu_custom_call.1} parent=5 // pred_check
      _
    $region10: #{tpu_custom_call.1} parent=5 // pred_check_branch
      %204 = sbr.rel (%p201) target = $region12
    $region11: #{tpu_custom_call.1} parent=5 // pred_region
      %s205 = ssub.s32 %s13, 1
      // Predicated region
      $region13: #{tpu_custom_call.1} parent=11 // pred_check
        %p206 = pneg %p60
      $region14: #{tpu_custom_call.1} parent=11 // pred_check_branch
        %208 = sbr.rel (%p206) target = $region16
      $region15: #{tpu_custom_call.1} parent=11 // pred_region
        _
      $region16: #{tpu_custom_call.1} parent=11 // pred_fallthru
        _
      // Predicated region
      $region17: #{tpu_custom_call.1} parent=11 // pred_check
        %p209 = pneg %p81
      $region18: #{tpu_custom_call.1} parent=11 // pred_check_branch
        %211 = sbr.rel (%p209) target = $region20
      $region19: #{tpu_custom_call.1} parent=11 // pred_region
        _
      $region20: #{tpu_custom_call.1} parent=11 // pred_fallthru
        _
      // Predicated region
      $region21: #{tpu_custom_call.1} parent=11 // pred_check
        %p212 = pneg %p102
      $region22: #{tpu_custom_call.1} parent=11 // pred_check_branch
        %214 = sbr.rel (%p212) target = $region24
      $region23: #{tpu_custom_call.1} parent=11 // pred_region
        _
      $region24: #{tpu_custom_call.1} parent=11 // pred_fallthru
        _
      // Predicated region
      $region25: #{tpu_custom_call.1} parent=11 // pred_check
        %p215 = pneg %p123
      $region26: #{tpu_custom_call.1} parent=11 // pred_check_branch
        %217 = sbr.rel (%p215) target = $region28
      $region27: #{tpu_custom_call.1} parent=11 // pred_region
        _
      $region28: #{tpu_custom_call.1} parent=11 // pred_fallthru
        _
      // Predicated region
      $region29: #{tpu_custom_call.1} parent=11 // pred_check
        %p218 = pneg %p144
      $region30: #{tpu_custom_call.1} parent=11 // pred_check_branch
        %220 = sbr.rel (%p218) target = $region32
      $region31: #{tpu_custom_call.1} parent=11 // pred_region
        _
      $region32: #{tpu_custom_call.1} parent=11 // pred_fallthru
        _
      // Predicated region
      $region33: #{tpu_custom_call.1} parent=11 // pred_check
        %p221 = pneg %p165
      $region34: #{tpu_custom_call.1} parent=11 // pred_check_branch
        %223 = sbr.rel (%p221) target = $region36
      $region35: #{tpu_custom_call.1} parent=11 // pred_region
        _
      $region36: #{tpu_custom_call.1} parent=11 // pred_fallthru
        _
    $region12: #{tpu_custom_call.1} parent=5 // pred_fallthru
      _
    %p224 = scmp.lt.s32.totalorder %s13, 8
    // Predicated region
    $region37: #{tpu_custom_call.1} parent=5 // pred_check
      %p225 = pneg %p224
    $region38: #{tpu_custom_call.1} parent=5 // pred_check_branch
      %227 = sbr.rel (%p225) target = $region40
    $region39: #{tpu_custom_call.1} parent=5 // pred_region
      // Predicated region
      $region41: #{tpu_custom_call.1} parent=39 // pred_check
        %p228 = pneg %p33
      $region42: #{tpu_custom_call.1} parent=39 // pred_check_branch
        %230 = sbr.rel (%p228) target = $region44
      $region43: #{tpu_custom_call.1} parent=39 // pred_region
        %s231 = smul.u32 4, %s13
        %p232 = scmp.lt.s32.totalorder %s231, 31
        %s233 = scalar_select %p232, %s231, 31
        %s234 = smul.addr %s233, 8
        %s235 = scalar_lea.vmem %s0, %s234
        %s236 = smul.u32 4, %s13
      $region44: #{tpu_custom_call.1} parent=39 // pred_fallthru
        _
    $region40: #{tpu_custom_call.1} parent=5 // pred_fallthru
      _
    %p237 = scmp.le.s32.totalorder 1, %s13
    %p238 = scmp.lt.s32.totalorder %s13, 9
    %p239 = pnand %p237, %p238
    %p240 = pneg %p239
    // Predicated region
    $region45: #{tpu_custom_call.1} parent=5 // pred_check
      _
    $region46: #{tpu_custom_call.1} parent=5 // pred_check_branch
      %242 = sbr.rel (%p239) target = $region48
    $region47: #{tpu_custom_call.1} parent=5 // pred_region
      %s243 = ssub.s32 %s13, 1
      %s244 = smul.u32 4, %s18
      %p245 = scmp.lt.s32.totalorder %s244, 31
      %s246 = scalar_select %p245, %s244, 31
      %s247 = smul.addr %s246, 8
      %s248 = scalar_lea.vmem %s0, %s247
      %p249 = pneg %p39
      %p250 = pneg %p36
      %p251 = pneg %p60
      %p252 = pneg %p57
      %p253 = pneg %p81
      %p254 = pneg %p78
      %p255 = pneg %p102
      %p256 = pneg %p99
      %p257 = pneg %p123
      %p258 = pneg %p120
      %p259 = pneg %p144
      %p260 = pneg %p141
      %p261 = pneg %p165
      %p262 = pneg %p162
      %p263 = pneg %p191
      %p264 = pneg %p188
      %s265 = smul.u32 4, %s18
      %p266 = scmp.lt.s32.totalorder %s265, 31
      %s267 = scalar_select %p266, %s265, 31
      %s268 = smul.addr %s267, 8
      %s269 = scalar_lea.vmem %s7, %s268
      %s270 = smul.u32 4, %s18
      %p271 = scmp.lt.s32.totalorder %s270, 31
      %s272 = scalar_select %p271, %s270, 31
      %s273 = smul.addr %s272, 8
      %s274 = scalar_lea.vmem %s0, %s273
      %s275 = smul.u32 4, %s18
      %s276 = smul.u32 4, %s18
      %p277 = scmp.lt.s32.totalorder %s276, 31
      %s278 = scalar_select %p277, %s276, 31
      %s279 = smul.addr %s278, 8
      %s280 = scalar_lea.vmem %s7, %s279
      %s281 = smul.u32 4, %s18
      %v282 = vld [vmem:[%s274] sm:$0xff]
      %v283 = vld [vmem:[%s274 + $0x8] sm:$0xff]
      %v284 = vld [vmem:[%s274 + $0x10] sm:$0xff]
      %v285 = vld [vmem:[%s274 + $0x18] sm:$0xff]
      %v286 = vld [vmem:[%s1] sm:$0xff]
      %v287 = vld [vmem:[%s1 + $0x8] sm:$0xff]
      %v288 = vld [vmem:[%s1 + $0x10] sm:$0xff]
      %v289 = vld [vmem:[%s1 + $0x18] sm:$0xff]
      %vm290 = vcmask 261120
      %v292 = vsel %vm290, %v282, 0
      %v295 = vsel %vm290, %v283, 0
      %v298 = vsel %vm290, %v284, 0
      %v301 = vsel %vm290, %v285, 0
      %303 = vmatprep.subr.mxu0 0.0
      %304 = vmatpush1.msra.mxu0 %v286
      %305 = vmatprep.subr.mxu0 0.0
      %306 = vmatpush1.msra.mxu0 %v287
      %307 = vmatprep.subr.mxu0 0.0
      %308 = vmatpush1.msra.mxu0 %v288
      %309 = vmatprep.subr.mxu0 0.0
      %310 = vmatpush1.msra.mxu0 %v289
      %311 = vmatprep.subr.mxu0 0.0
      %312 = vmatpush1.msra.mxu0 0.0
      %313 = vmatprep.subr.mxu0 0.0
      %314 = vmatpush1.msra.mxu0 0.0
      %315 = vmatprep.subr.mxu0 0.0
      %316 = vmatpush1.msra.mxu0 0.0
      %317 = vmatprep.subr.mxu0 0.0
      %318 = vmatpush1.msra.mxu0 0.0
      %319 = vmatprep.subr.mxu0 0.0
      %320 = vmatpush1.msra.mxu0 0.0
      %321 = vmatprep.subr.mxu0 0.0
      %322 = vmatpush1.msra.mxu0 0.0
      %323 = vmatprep.subr.mxu0 0.0
      %324 = vmatpush1.msra.mxu0 0.0
      %325 = vmatprep.subr.mxu0 0.0
      %326 = vmatpush1.msra.mxu0 0.0
      %327 = vmatprep.subr.mxu0 0.0
      %328 = vmatpush1.msra.mxu0 0.0
      %329 = vmatprep.subr.mxu0 0.0
      %330 = vmatpush1.msra.mxu0 0.0
      %331 = vmatprep.subr.mxu0 0.0
      %332 = vmatpush1.msra.mxu0 0.0
      %333 = vmatprep.subr.mxu0 0.0
      %334 = vmatpush1.msra.mxu0 0.0
      %335 = vmatprep.subr.mxu0 0.0
      %336 = vmatpush1.msra.mxu0 0.0
      %337 = vmatprep.subr.mxu0 0.0
      %338 = vmatpush1.msra.mxu0 0.0
      %339 = vmatprep.subr.mxu0 0.0
      %340 = vmatpush1.msra.mxu0 0.0
      %341 = vmatprep.subr.mxu0 0.0
      %342 = vmatpush1.msra.mxu0 0.0
      %343 = vmatprep.subr.mxu0 0.0
      %344 = vmatpush1.msra.mxu0 0.0
      %345 = vmatprep.subr.mxu0 0.0
      %346 = vmatpush1.msra.mxu0 0.0
      %347 = vmatprep.subr.mxu0 0.0
      %348 = vmatpush1.msra.mxu0 0.0
      %349 = vmatprep.subr.mxu0 0.0
      %350 = vmatpush1.msra.mxu0 0.0
      %351 = vmatprep.subr.mxu0 0.0
      %352 = vmatpush1.msra.mxu0 0.0
      %353 = vmatprep.subr.mxu0 0.0
      %354 = vmatpush1.msra.mxu0 0.0
      %355 = vmatprep.subr.mxu0 0.0
      %356 = vmatpush1.msra.mxu0 0.0
      %357 = vmatprep.subr.mxu0 0.0
      %358 = vmatpush1.msra.mxu0 0.0
      %359 = vmatprep.subr.mxu0 0.0
      %360 = vmatpush1.msra.mxu0 0.0
      %361 = vmatprep.subr.mxu0 0.0
      %362 = vmatpush1.msra.mxu0 0.0
      %363 = vmatprep.subr.mxu0 0.0
      %364 = vmatpush1.msra.mxu0 0.0
      %365 = vmatprep.subr.mxu0 0.0
      %366 = vmatpush1.msra.mxu0 0.0
      %367 = vmatprep.mubr.f32.mxu0 0.0
      %368 = vmatmul.mubr.f32.gmra.mrb[0].mxu0 %v292
      %v369 = vpop.f32.mrb[0].mxu0
      %v370 = vadd.f32 0.0, %v369
      %v371 = vpop.f32.mrb[0].mxu0
      %372 = vmatprep.mubr.f32.mxu0 0.0
      %373 = vmatmul.mubr.f32.gmra.mrb[0].mxu0 %v295
      %v374 = vpop.f32.mrb[0].mxu0
      %v375 = vadd.f32 0.0, %v374
      %v376 = vpop.f32.mrb[0].mxu0
      %377 = vmatprep.mubr.f32.mxu0 0.0
      %378 = vmatmul.mubr.f32.gmra.mrb[0].mxu0 %v298
      %v379 = vpop.f32.mrb[0].mxu0
      %v380 = vadd.f32 0.0, %v379
      %v381 = vpop.f32.mrb[0].mxu0
      %382 = vmatprep.mubr.f32.mxu0 0.0
      %383 = vmatmul.mubr.f32.gmra.mrb[0].mxu0 %v301
      %v384 = vpop.f32.mrb[0].mxu0
      %v385 = vadd.f32 0.0, %v384
      %v386 = vpop.f32.mrb[0].mxu0
      %387 = vdwg.mxu0
      %v388 = vld [vmem:[%s2] sm:$0x1]
      %v390 = vlaneseq
      %v391 = vshrl.u32 %v390, 7
      %v392 = vsub.s32 0, %v391
      %v393 = vrot.slane %v388, %v392
      %v395 = vmul.f32 %v370, %v393
      %v396 = vmul.f32 %v375, %v393
      %v397 = vmul.f32 %v380, %v393
      %v398 = vmul.f32 %v385, %v393
      %v399 = vld [vmem:[%s3] sm:$0x1]
      %v401 = vlaneseq
      %v402 = vshrl.u32 %v401, 7
      %v403 = vsub.s32 0, %v402
      %v404 = vrot.slane %v399, %v403
      %v406 = vadd.f32 %v395, %v404
      %v407 = vadd.f32 %v396, %v404
      %v408 = vadd.f32 %v397, %v404
      %v409 = vadd.f32 %v398, %v404
      %v410 = vmax.f32 %v406, 0.0
      %v411 = vmax.f32 %v407, 0.0
      %v412 = vmax.f32 %v408, 0.0
      %v413 = vmax.f32 %v409, 0.0
      %v414 = vld [vmem:[%s4] sm:$0xff]
      %v415 = vld [vmem:[%s4 + $0x8] sm:$0xff]
      %v416 = vld [vmem:[%s4 + $0x10] sm:$0xff]
      %v417 = vld [vmem:[%s4 + $0x18] sm:$0xff]
      %v418 = vld [vmem:[%s4 + $0x20] sm:$0xff]
      %v419 = vld [vmem:[%s4 + $0x28] sm:$0xff]
      %v420 = vld [vmem:[%s4 + $0x30] sm:$0xff]
      %v421 = vld [vmem:[%s4 + $0x38] sm:$0xff]
      %vm422 = vcmask 523264
      %v424 = vsel %vm422, %v410, 0
      %v427 = vsel %vm422, %v411, 0
      %v430 = vsel %vm422, %v412, 0
      %v433 = vsel %vm422, %v413, 0
      %435 = vmatprep.subr.mxu0 0.0
      %436 = vmatpush1.msra.mxu0 %v414
      %437 = vmatprep.subr.mxu0 0.0
      %438 = vmatpush1.msra.mxu0 %v415
      %439 = vmatprep.subr.mxu0 0.0
      %440 = vmatpush1.msra.mxu0 %v416
      %441 = vmatprep.subr.mxu0 0.0
      %442 = vmatpush1.msra.mxu0 %v417
      %443 = vmatprep.subr.mxu0 0.0
      %444 = vmatpush1.msra.mxu0 %v418
      %445 = vmatprep.subr.mxu0 0.0
      %446 = vmatpush1.msra.mxu0 %v419
      %447 = vmatprep.subr.mxu0 0.0
      %448 = vmatpush1.msra.mxu0 %v420
      %449 = vmatprep.subr.mxu0 0.0
      %450 = vmatpush1.msra.mxu0 %v421
      %451 = vmatprep.subr.mxu0 0.0
      %452 = vmatpush1.msra.mxu0 0.0
      %453 = vmatprep.subr.mxu0 0.0
      %454 = vmatpush1.msra.mxu0 0.0
      %455 = vmatprep.subr.mxu0 0.0
      %456 = vmatpush1.msra.mxu0 0.0
      %457 = vmatprep.subr.mxu0 0.0
      %458 = vmatpush1.msra.mxu0 0.0
      %459 = vmatprep.subr.mxu0 0.0
      %460 = vmatpush1.msra.mxu0 0.0
      %461 = vmatprep.subr.mxu0 0.0
      %462 = vmatpush1.msra.mxu0 0.0
      %463 = vmatprep.subr.mxu0 0.0
      %464 = vmatpush1.msra.mxu0 0.0
      %465 = vmatprep.subr.mxu0 0.0
      %466 = vmatpush1.msra.mxu0 0.0
      %467 = vmatprep.subr.mxu0 0.0
      %468 = vmatpush1.msra.mxu0 0.0
      %469 = vmatprep.subr.mxu0 0.0
      %470 = vmatpush1.msra.mxu0 0.0
      %471 = vmatprep.subr.mxu0 0.0
      %472 = vmatpush1.msra.mxu0 0.0
      %473 = vmatprep.subr.mxu0 0.0
      %474 = vmatpush1.msra.mxu0 0.0
      %475 = vmatprep.subr.mxu0 0.0
      %476 = vmatpush1.msra.mxu0 0.0
      %477 = vmatprep.subr.mxu0 0.0
      %478 = vmatpush1.msra.mxu0 0.0
      %479 = vmatprep.subr.mxu0 0.0
      %480 = vmatpush1.msra.mxu0 0.0
      %481 = vmatprep.subr.mxu0 0.0
      %482 = vmatpush1.msra.mxu0 0.0
      %483 = vmatprep.subr.mxu0 0.0
      %484 = vmatpush1.msra.mxu0 0.0
      %485 = vmatprep.subr.mxu0 0.0
      %486 = vmatpush1.msra.mxu0 0.0
      %487 = vmatprep.subr.mxu0 0.0
      %488 = vmatpush1.msra.mxu0 0.0
      %489 = vmatprep.subr.mxu0 0.0
      %490 = vmatpush1.msra.mxu0 0.0
      %491 = vmatprep.subr.mxu0 0.0
      %492 = vmatpush1.msra.mxu0 0.0
      %493 = vmatprep.subr.mxu0 0.0
      %494 = vmatpush1.msra.mxu0 0.0
      %495 = vmatprep.subr.mxu0 0.0
      %496 = vmatpush1.msra.mxu0 0.0
      %497 = vmatprep.subr.mxu0 0.0
      %498 = vmatpush1.msra.mxu0 0.0
      %499 = vmatprep.mubr.f32.mxu0 0.0
      %500 = vmatmul.mubr.f32.gmra.mrb[0].mxu0 %v424
      %v501 = vpop.f32.mrb[0].mxu0
      %v502 = vadd.f32 0.0, %v501
      %v503 = vpop.f32.mrb[0].mxu0
      %504 = vmatprep.mubr.f32.mxu0 0.0
      %505 = vmatmul.mubr.f32.gmra.mrb[0].mxu0 %v427
      %v506 = vpop.f32.mrb[0].mxu0
      %v507 = vadd.f32 0.0, %v506
      %v508 = vpop.f32.mrb[0].mxu0
      %509 = vmatprep.mubr.f32.mxu0 0.0
      %510 = vmatmul.mubr.f32.gmra.mrb[0].mxu0 %v430
      %v511 = vpop.f32.mrb[0].mxu0
      %v512 = vadd.f32 0.0, %v511
      %v513 = vpop.f32.mrb[0].mxu0
      %514 = vmatprep.mubr.f32.mxu0 0.0
      %515 = vmatmul.mubr.f32.gmra.mrb[0].mxu0 %v433
      %v516 = vpop.f32.mrb[0].mxu0
      %v517 = vadd.f32 0.0, %v516
      %v518 = vpop.f32.mrb[0].mxu0
      %519 = vdwg.mxu0
      %v520 = vld [vmem:[%s5] sm:$0x1]
      %v522 = vlaneseq
      %v523 = vshrl.u32 %v522, 7
      %v524 = vsub.s32 0, %v523
      %v525 = vrot.slane %v520, %v524
      %v527 = vmul.f32 %v502, %v525
      %v528 = vmul.f32 %v507, %v525
      %v529 = vmul.f32 %v512, %v525
      %v530 = vmul.f32 %v517, %v525
      %v531 = vld [vmem:[%s6] sm:$0x1]
      %v533 = vlaneseq
      %v534 = vshrl.u32 %v533, 7
      %v535 = vsub.s32 0, %v534
      %v536 = vrot.slane %v531, %v535
      %v538 = vadd.f32 %v527, %v536
      %v539 = vadd.f32 %v528, %v536
      %v540 = vadd.f32 %v529, %v536
      %v541 = vadd.f32 %v530, %v536
      %v542 = vmax.f32 %v538, 0.0
      %v543 = vmax.f32 %v539, 0.0
      %v544 = vmax.f32 %v540, 0.0
      %v545 = vmax.f32 %v541, 0.0
      %546 = vst.msk [vmem:[%s280] sm:$0xff] %vm290, %v542
      %547 = vst.msk [vmem:[%s280 + $0x8] sm:$0xff] %vm290, %v543
      %548 = vst.msk [vmem:[%s280 + $0x10] sm:$0xff] %vm290, %v544
      %549 = vst.msk [vmem:[%s280 + $0x18] sm:$0xff] %vm290, %v545
      %s550 = smul.u32 4, %s18
      %p551 = scmp.lt.s32.totalorder %s550, 31
      %s552 = scalar_select %p551, %s550, 31
      %s553 = smul.addr %s552, 8
      %s554 = scalar_lea.vmem %s7, %s553
      // Predicated region
      $region49: #{tpu_custom_call.1} parent=47 // pred_check
        %p555 = pneg %p188
      $region50: #{tpu_custom_call.1} parent=47 // pred_check_branch
        %557 = sbr.rel (%p555) target = $region52
      $region51: #{tpu_custom_call.1} parent=47 // pred_region
        %s558 = smul.u32 4, %s18
      $region52: #{tpu_custom_call.1} parent=47 // pred_fallthru
        _
    $region48: #{tpu_custom_call.1} parent=5 // pred_fallthru
      _
    %p559 = scmp.le.s32.totalorder 2, %s13
    // Predicated region
    $region53: #{tpu_custom_call.1} parent=5 // pred_check
      %p560 = pneg %p559
    $region54: #{tpu_custom_call.1} parent=5 // pred_check_branch
      %562 = sbr.rel (%p560) target = $region56
    $region55: #{tpu_custom_call.1} parent=5 // pred_region
      %s563 = ssub.s32 %s13, 2
      // Predicated region
      $region57: #{tpu_custom_call.1} parent=55 // pred_check
        %p564 = pneg %p194
      $region58: #{tpu_custom_call.1} parent=55 // pred_check_branch
        %566 = sbr.rel (%p564) target = $region60
      $region59: #{tpu_custom_call.1} parent=55 // pred_region
        %s567 = smul.u32 4, %s19
        %p568 = scmp.lt.s32.totalorder %s567, 31
        %s569 = scalar_select %p568, %s567, 31
        %s570 = smul.addr %s569, 8
        %s571 = scalar_lea.vmem %s7, %s570
      $region60: #{tpu_custom_call.1} parent=55 // pred_fallthru
        _
    $region56: #{tpu_custom_call.1} parent=5 // pred_fallthru
      _
  $region6: #{tpu_custom_call.1} parent=0 // loop_footer
    %s17 = sadd.s32 1, %s13
  $region7: #{tpu_custom_call.1} parent=0 // loop_footer_branch
    %12 = sbr.rel target = $region3
  $region8: #{tpu_custom_call.1} parent=0 // loop_exit
    _

</llo_original>
